<compile_context>
chip_gen: v5e
topology: v5e:2x2
jax: 0.10.0
libtpu: 0.0.40
codegen_flags: <defaults>
</compile_context>

<pallas_src>
import jax
import jax.numpy as jnp
from jax.experimental import pallas as pl
from jax.experimental.pallas import tpu as pltpu


def _round_up(n: int, m: int) -> int:
    return ((n + m - 1) // m) * m


def _sublane(dtype) -> int:
    # Sub-32-bit dtypes pack along sublanes: 8 rows for f32, 16 for bf16, 32 for int8/fp8.
    return max(8, 32 // jnp.dtype(dtype).itemsize)


def _batch_tile(B: int, block_b: int, dtype) -> int:
    sub = _sublane(dtype)
    # Cap the tile at ceil(B/2) (rounded to the sublane packing) so the batch grid
    # has >= 2 blocks whenever B allows it -> both v7x TensorCores get work.
    cap = max(sub, _round_up(pl.cdiv(B, 2), sub))
    return min(_round_up(max(block_b, sub), sub), cap)


# ----------------------------- kernels --------------------------------------

def _fused_affine_kernel(x_ref, w_ref, b_ref, out_ref):
    # y = x @ (W1 @ W2) + (b1 @ W2 + b2): one MXU matmul (f32 accumulation) plus
    # a VPU bias add (free filler next to the MXU).
    y = jnp.dot(x_ref[...], w_ref[...], preferred_element_type=jnp.float32)
    out_ref[...] = (y + b_ref[...].astype(jnp.float32)).astype(out_ref.dtype)


def _two_layer_kernel(x_ref, w1_ref, b1_ref, w2_ref, b2_ref, out_ref):
    # Low-rank hidden layer (fusion would inflate the weight): run both matmuls
    # inside one kernel so the intermediate `h` never round-trips through HBM.
    h = jnp.dot(x_ref[...], w1_ref[...], preferred_element_type=jnp.float32)
    h = (h + b1_ref[...].astype(jnp.float32)).astype(x_ref.dtype)
    y = jnp.dot(h, w2_ref[...], preferred_element_type=jnp.float32)
    out_ref[...] = (y + b2_ref[...].astype(jnp.float32)).astype(out_ref.dtype)


# ----------------------------- wrapper ---------------------------------------

def precompute_encoder_params(w1, b1, w2, b2):
    """One-time parameter prep, hoisted out of the per-call forward.

    Fuses the two Linear layers into a single affine map only when the fused
    [F, K] weight is no larger than the original pair (H >= F*K/(F+K)).
    """
    F, H = w1.shape
    K = w2.shape[1]
    if H * (F + K) >= F * K:
        w = jnp.dot(w1, w2, preferred_element_type=jnp.float32).astype(w1.dtype)
        b = (jnp.dot(b1, w2, preferred_element_type=jnp.float32) + b2).astype(b1.dtype)
        return ("fused", (w, b))
    return ("two_layer", (w1, b1, w2, b2))


def encoder_forward(x, params, *, block_b: int = 1024):
    """Encoder forward. x: [B, F] -> [B, K]. `params` from precompute_encoder_params."""
    mode, ps = params
    B, F = x.shape
    dtype = x.dtype
    itemsize = jnp.dtype(dtype).itemsize

    TB = _batch_tile(B, block_b, dtype)
    grid = (pl.cdiv(B, TB),)  # ragged last block: OOB rows are clipped on store

    if mode == "fused":
        w, b = ps
        K = w.shape[1]
        kernel = _fused_affine_kernel
        operands = (x, w, b)
        resident_shapes = (w.shape, b.shape)
        resident_bytes = (w.size + b.size) * itemsize
    else:
        w1, b1, w2, b2 = ps
        H = w1.shape[1]
        K = w2.shape[1]
        kernel = _two_layer_kernel
        operands = (x, w1, b1, w2, b2)
        resident_shapes = (w1.shape, b1.shape, w2.shape, b2.shape)
        resident_bytes = (w1.size + b1.size + w2.size + b2.size) * itemsize + TB * H * 4

    # Explicit VMEM budget: double-buffered x/out tiles + resident weights (+headroom).
    tile_bytes = TB * (F + K) * itemsize
    vmem_limit = int(min(32 * 1024 * 1024,
                         max(4 * 1024 * 1024, 2 * (2 * tile_bytes + resident_bytes))))

    out_shape = jax.ShapeDtypeStruct((B, K), dtype)
    # NOTE: for production-sized fused weights (> ~1/4 of v7x's 64 MiB VMEM), add a
    # second grid axis over K (weight block (F, TK), output block (TB, TK)).

    def run(single_buffer_resident: bool):
        def resident_spec(shape):
            if single_buffer_resident:
                return pl.BlockSpec(shape, lambda i: (0, 0),
                                    pipeline_mode=pl.Buffered(1))
            return pl.BlockSpec(shape, lambda i: (0, 0))

        in_specs = [pl.BlockSpec((TB, F), lambda i: (i, 0))]   # x: pipelined over batch
        in_specs += [resident_spec(s) for s in resident_shapes]  # weights/bias: resident

        return pl.pallas_call(
            kernel,
            out_shape=out_shape,
            grid=grid,
            in_specs=in_specs,
            out_specs=pl.BlockSpec((TB, K), lambda i: (i, 0)),
            compiler_params=pltpu.CompilerParams(
                dimension_semantics=("parallel",),  # lets v7x split batch across 2 TCs
                vmem_limit_bytes=vmem_limit,
            ),
        )(*operands)

    try:
        return run(single_buffer_resident=True)
    except Exception:
        # Installed Pallas does not honor per-operand pipeline_mode -> default buffering.
        return run(single_buffer_resident=False)


def init_linear_params(key, fan_in, fan_out, dtype=jnp.float32):
    """Deterministic init mirroring torch.nn.Linear default (U(-1/sqrt(fan_in), +))."""
    kw, kb = jax.random.split(key)
    bound = 1.0 / jnp.sqrt(jnp.asarray(fan_in, dtype))
    # Stored as [fan_in, fan_out] (transposed vs. PyTorch's [out, in]).
    w = jax.random.uniform(kw, (fan_in, fan_out), dtype, -bound, bound)
    b = jax.random.uniform(kb, (1, fan_out), dtype, -bound, bound)
    return w, b


if __name__ == "__main__":
    key = jax.random.PRNGKey(0)

    # --- Test 1: fused path (H >= F*K/(F+K)), ragged batch grid of 2 blocks. ---
    batch, n_features, n_hidden, n_bottleneck = 200, 32, 64, 16
    kx, k1, k2, key = jax.random.split(key, 4)
    x = jax.random.normal(kx, (batch, n_features), jnp.float32)
    w1, b1 = init_linear_params(k1, n_features, n_hidden)
    w2, b2 = init_linear_params(k2, n_hidden, n_bottleneck)

    params = precompute_encoder_params(w1, b1, w2, b2)   # hoisted one-time fusion
    assert params[0] == "fused"
    encoded = jax.block_until_ready(encoder_forward(x, params))
    ref = (x @ w1 + b1) @ w2 + b2
    assert encoded.shape == (batch, n_bottleneck)
    assert jnp.allclose(encoded, ref, atol=1e-4, rtol=1e-4), (
        float(jnp.max(jnp.abs(encoded - ref))))

    # --- Test 2: low-rank hidden layer -> two-matmul in-kernel path. ----------
    batch2, f2, h2, k2_dim = 64, 48, 8, 40
    kx2, k3, k4 = jax.random.split(key, 3)
    x2 = jax.random.normal(kx2, (batch2, f2), jnp.float32)
    w1b, b1b = init_linear_params(k3, f2, h2)
    w2b, b2b = init_linear_params(k4, h2, k2_dim)

    params2 = precompute_encoder_params(w1b, b1b, w2b, b2b)
    assert params2[0] == "two_layer"
    encoded2 = jax.block_until_ready(encoder_forward(x2, params2))
    ref2 = (x2 @ w1b + b1b) @ w2b + b2b
    assert encoded2.shape == (batch2, k2_dim)
    assert jnp.allclose(encoded2, ref2, atol=1e-4, rtol=1e-4), (
        float(jnp.max(jnp.abs(encoded2 - ref2))))

    print("KERNEL_OK")
</pallas_src>

<mosaic_0001>
module attributes {stable_mosaic.version = 11 : i64} {
  func.func @_fused_affine_kernel(%arg0: i32, %arg1: memref<104x32xf32, #tpu.memory_space<vmem>>, %arg2: memref<32x16xf32, #tpu.memory_space<vmem>>, %arg3: memref<1x16xf32, #tpu.memory_space<vmem>>, %arg4: memref<104x16xf32, #tpu.memory_space<vmem>>) attributes {dimension_semantics = [#tpu.dimension_semantics<parallel>], iteration_bounds = array<i64: 2>, scalar_prefetch = 0 : i64, scratch_operands = 0 : i64, tpu.core_type = #tpu.core_type<tc>, window_params = [{transform_indices = @transform_0, window_bounds = array<i64: 104, 32>}, {pipeline_mode = #tpu.pipeline_mode<synchronous>, transform_indices = @transform_1, window_bounds = array<i64: 32, 16>}, {pipeline_mode = #tpu.pipeline_mode<synchronous>, transform_indices = @transform_2, window_bounds = array<i64: 1, 16>}, {transform_indices = @transform_3, window_bounds = array<i64: 104, 16>}]} {
    %c0 = arith.constant 0 : index
    %c0_0 = arith.constant 0 : index
    %0 = vector.load %arg1[%c0, %c0_0] : memref<104x32xf32, #tpu.memory_space<vmem>>, vector<104x32xf32>
    %c0_1 = arith.constant 0 : index
    %c0_2 = arith.constant 0 : index
    %1 = vector.load %arg2[%c0_1, %c0_2] : memref<32x16xf32, #tpu.memory_space<vmem>>, vector<32x16xf32>
    %cst = arith.constant dense<0.000000e+00> : vector<104x16xf32>
    %2 = tpu.matmul %0, %1, %cst {dimension_numbers = #tpu.dot_dimension_numbers<[1], [0], [0], [1], [0, 0, 1, 1], [], []>} : vector<104x32xf32>, vector<32x16xf32>, vector<104x16xf32> -> vector<104x16xf32>
    %c0_3 = arith.constant 0 : index
    %c0_4 = arith.constant 0 : index
    %3 = vector.load %arg3[%c0_3, %c0_4] : memref<1x16xf32, #tpu.memory_space<vmem>>, vector<1x16xf32>
    %4 = vector.broadcast %3 : vector<1x16xf32> to vector<104x16xf32>
    %5 = arith.addf %2, %4 : vector<104x16xf32>
    %c0_5 = arith.constant 0 : index
    %c0_6 = arith.constant 0 : index
    %6 = vector.load %arg4[%c0_5, %c0_6] : memref<104x16xf32, #tpu.memory_space<vmem>>, vector<104x16xf32>
    tpu.vector_store %arg4[%c0_5, %c0_6], %5 {strides = array<i32>} : memref<104x16xf32, #tpu.memory_space<vmem>>, vector<104x16xf32>,
    return
  }
  func.func @transform_0(%arg0: i32) -> (i32, i32) {
    %c0_i32 = arith.constant 0 : i32
    %c0_i32_0 = arith.constant 0 : i32
    return %arg0, %c0_i32 : i32, i32
  }
  func.func @transform_1(%arg0: i32) -> (i32, i32) {
    %c0_i32 = arith.constant 0 : i32
    %c0_i32_0 = arith.constant 0 : i32
    %c0_i32_1 = arith.constant 0 : i32
    return %c0_i32, %c0_i32_0 : i32, i32
  }
  func.func @transform_2(%arg0: i32) -> (i32, i32) {
    %c0_i32 = arith.constant 0 : i32
    %c0_i32_0 = arith.constant 0 : i32
    %c0_i32_1 = arith.constant 0 : i32
    return %c0_i32, %c0_i32_0 : i32, i32
  }
  func.func @transform_3(%arg0: i32) -> (i32, i32) {
    %c0_i32 = arith.constant 0 : i32
    %c0_i32_0 = arith.constant 0 : i32
    return %arg0, %c0_i32 : i32, i32
  }
}

module attributes {stable_mosaic.version = 11 : i64} {
  func.func @_fused_affine_kernel(%arg0: i32, %arg1: memref<104x32xf32, #tpu.memory_space<vmem>>, %arg2: memref<32x16xf32, #tpu.memory_space<vmem>>, %arg3: memref<1x16xf32, #tpu.memory_space<vmem>>, %arg4: memref<104x16xf32, #tpu.memory_space<vmem>>) attributes {dimension_semantics = [#tpu.dimension_semantics<parallel>], iteration_bounds = array<i64: 2>, scalar_prefetch = 0 : i64, scratch_operands = 0 : i64, tpu.core_type = #tpu.core_type<tc>, window_params = [{transform_indices = @transform_0, window_bounds = array<i64: 104, 32>}, {pipeline_mode = #tpu.pipeline_mode<synchronous>, transform_indices = @transform_1, window_bounds = array<i64: 32, 16>}, {pipeline_mode = #tpu.pipeline_mode<synchronous>, transform_indices = @transform_2, window_bounds = array<i64: 1, 16>}, {transform_indices = @transform_3, window_bounds = array<i64: 104, 16>}]} {
    %c0 = arith.constant 0 : index
    %c0_0 = arith.constant 0 : index
    %0 = vector.load %arg1[%c0, %c0_0] : memref<104x32xf32, #tpu.memory_space<vmem>>, vector<104x32xf32>
    %c0_1 = arith.constant 0 : index
    %c0_2 = arith.constant 0 : index
    %1 = vector.load %arg2[%c0_1, %c0_2] : memref<32x16xf32, #tpu.memory_space<vmem>>, vector<32x16xf32>
    %cst = arith.constant dense<0.000000e+00> : vector<104x16xf32>
    %2 = tpu.matmul %0, %1, %cst {dimension_numbers = #tpu.dot_dimension_numbers<[1], [0], [0], [1], [0, 0, 1, 1], [], []>} : vector<104x32xf32>, vector<32x16xf32>, vector<104x16xf32> -> vector<104x16xf32>
    %c0_3 = arith.constant 0 : index
    %c0_4 = arith.constant 0 : index
    %3 = vector.load %arg3[%c0_3, %c0_4] : memref<1x16xf32, #tpu.memory_space<vmem>>, vector<1x16xf32>
    %4 = vector.broadcast %3 : vector<1x16xf32> to vector<104x16xf32>
    %5 = arith.addf %2, %4 : vector<104x16xf32>
    %c0_5 = arith.constant 0 : index
    %c0_6 = arith.constant 0 : index
    %6 = vector.load %arg4[%c0_5, %c0_6] : memref<104x16xf32, #tpu.memory_space<vmem>>, vector<104x16xf32>
    tpu.vector_store %arg4[%c0_5, %c0_6], %5 {strides = array<i32>} : memref<104x16xf32, #tpu.memory_space<vmem>>, vector<104x16xf32>,
    return
  }
  func.func @transform_0(%arg0: i32) -> (i32, i32) {
    %c0_i32 = arith.constant 0 : i32
    %c0_i32_0 = arith.constant 0 : i32
    return %arg0, %c0_i32 : i32, i32
  }
  func.func @transform_1(%arg0: i32) -> (i32, i32) {
    %c0_i32 = arith.constant 0 : i32
    %c0_i32_0 = arith.constant 0 : i32
    %c0_i32_1 = arith.constant 0 : i32
    return %c0_i32, %c0_i32_0 : i32, i32
  }
  func.func @transform_2(%arg0: i32) -> (i32, i32) {
    %c0_i32 = arith.constant 0 : i32
    %c0_i32_0 = arith.constant 0 : i32
    %c0_i32_1 = arith.constant 0 : i32
    return %c0_i32, %c0_i32_0 : i32, i32
  }
  func.func @transform_3(%arg0: i32) -> (i32, i32) {
    %c0_i32 = arith.constant 0 : i32
    %c0_i32_0 = arith.constant 0 : i32
    return %arg0, %c0_i32 : i32, i32
  }
}

</mosaic_0001>

<llo_original>
// kernel: tpu_custom_call.1
$region0: #{tpu_custom_call.1}
  #allocation0 [shape = 'u32[]', space=smem, size = 0x4, offset = 0x4, fixed_abs, tag = 'smem constant byte address 0x4 - core index']
  #allocation1 [shape = 'u32[72,128]{1,0:T(1,128)}', space=vmem, size = 0x9000, scoped, tag = 'internal scratch']
  %s0 = inlined_call_operand.vmem [shape: f32[200,32], index: 0, kind: input, shape index: {}]
  %s1 = inlined_call_operand.vmem [shape: f32[32,16], index: 1, kind: input, shape index: {}]
  %s2 = inlined_call_operand.vmem [shape: f32[1,16], index: 2, kind: input, shape index: {}]
  %s3 = inlined_call_operand.vmem [shape: f32[200,16], index: 3, kind: output, shape index: {}]
  %s4 = sld [smem:[#allocation0]]
  $region93: #{tpu_custom_call.1} parent=0
    _
  %s6 = ssub.s32 1, %s4
  %s7 = scalar_select 0, %s6, %s4
  $region1: #{tpu_custom_call.1} parent=0
    #allocation2 [shape = 'u8[106496]{0}', space=vmem, size = 0x1a000, scoped, tag = 'output window, operand 0']
    loop: start=0, step=1, limit=4
    $region2: #{tpu_custom_call.1} parent=1 // loop_pre_header
      _
    $region3: #{tpu_custom_call.1} parent=1 // loop_header
      %s9 = sphi 0, %s13
      %p10 = scmp.ge.s32.totalorder %s9, 4
      %s19 = sphi 0, %s21
      %s22 = sphi 0, %s19
      %s23 = sphi 0, %s22
      %s39 = sphi 0, %s23
      %s43 = sphi 0, %s43
      %s45 = sphi 0, %s43
      %s46 = sphi 0, %s45
      %s60 = sphi 0, %s46
      %s64 = sphi 0, %s64
      %s66 = sphi 0, %s64
      %s67 = sphi 0, %s66
      %s81 = sphi 0, %s67
      %s87 = sphi 0, %s89
      %s90 = sphi 0, %s87
      %s91 = sphi 0, %s90
      %s107 = sphi 0, %s91
    $region4: #{tpu_custom_call.1} parent=1 // loop_header_branch
      %12 = sbr.rel (%p10) target = $region8
    $region5: #{tpu_custom_call.1} parent=1 // loop_body
      %s14 = ssub.s32 %s9, 1
      %s15 = ssub.s32 %s9, 2
      %s16 = sadd.s32 %s9, 1
      %s17 = ssub.s32 %s9, %s16
      %p18 = scmp.eq.s32.totalorder %s17, 0
      %s20 = sadd.s32 %s19, 1
      %s21 = scalar_select %p18, %s19, %s20
      %p24 = pneg %p18
      %p25 = scmp.eq.s32.totalorder %s9, 1
      %p26 = por %p24, %p25
      %p27 = scmp.ne.s32.totalorder %s19, %s22
      %p28 = scmp.eq.s32.totalorder %s9, 0
      %p29 = por %p27, %p28
      %p30 = scmp.ne.s32.totalorder %s19, %s22
      %p31 = scmp.eq.s32.totalorder %s14, 1
      %p32 = por %p30, %p31
      %p33 = scmp.ne.s32.totalorder %s22, %s23
      %p34 = scmp.eq.s32.totalorder %s14, 0
      %p35 = por %p33, %p34
      %p36 = scmp.ne.s32.totalorder %s22, %s23
      %p37 = scmp.eq.s32.totalorder %s15, 1
      %p38 = por %p36, %p37
      %p40 = scmp.ne.s32.totalorder %s23, %s39
      %p41 = scmp.eq.s32.totalorder %s15, 0
      %p42 = por %p40, %p41
      %s44 = sadd.s32 %s43, 1
      %p47 = scmp.eq.s32.totalorder %s9, 1
      %p48 = scmp.ne.s32.totalorder %s43, %s45
      %p49 = scmp.eq.s32.totalorder %s9, 0
      %p50 = por %p48, %p49
      %p51 = scmp.ne.s32.totalorder %s43, %s45
      %p52 = scmp.eq.s32.totalorder %s14, 1
      %p53 = por %p51, %p52
      %p54 = scmp.ne.s32.totalorder %s45, %s46
      %p55 = scmp.eq.s32.totalorder %s14, 0
      %p56 = por %p54, %p55
      %p57 = scmp.ne.s32.totalorder %s45, %s46
      %p58 = scmp.eq.s32.totalorder %s15, 1
      %p59 = por %p57, %p58
      %p61 = scmp.ne.s32.totalorder %s46, %s60
      %p62 = scmp.eq.s32.totalorder %s15, 0
      %p63 = por %p61, %p62
      %s65 = sadd.s32 %s64, 1
      %p68 = scmp.eq.s32.totalorder %s9, 1
      %p69 = scmp.ne.s32.totalorder %s64, %s66
      %p70 = scmp.eq.s32.totalorder %s9, 0
      %p71 = por %p69, %p70
      %p72 = scmp.ne.s32.totalorder %s64, %s66
      %p73 = scmp.eq.s32.totalorder %s14, 1
      %p74 = por %p72, %p73
      %p75 = scmp.ne.s32.totalorder %s66, %s67
      %p76 = scmp.eq.s32.totalorder %s14, 0
      %p77 = por %p75, %p76
      %p78 = scmp.ne.s32.totalorder %s66, %s67
      %p79 = scmp.eq.s32.totalorder %s15, 1
      %p80 = por %p78, %p79
      %p82 = scmp.ne.s32.totalorder %s67, %s81
      %p83 = scmp.eq.s32.totalorder %s15, 0
      %p84 = por %p82, %p83
      %s85 = ssub.s32 %s9, %s16
      %p86 = scmp.eq.s32.totalorder %s85, 0
      %s88 = sadd.s32 %s87, 1
      %s89 = scalar_select %p86, %s87, %s88
      %p92 = pneg %p86
      %p93 = scmp.eq.s32.totalorder %s9, 1
      %p94 = por %p92, %p93
      %p95 = scmp.ne.s32.totalorder %s87, %s90
      %p96 = scmp.eq.s32.totalorder %s9, 0
      %p97 = por %p95, %p96
      %p98 = scmp.ne.s32.totalorder %s87, %s90
      %p99 = scmp.eq.s32.totalorder %s14, 1
      %p100 = por %p98, %p99
      %p101 = scmp.ne.s32.totalorder %s90, %s91
      %p102 = scmp.eq.s32.totalorder %s14, 0
      %p103 = por %p101, %p102
      %p104 = scmp.ne.s32.totalorder %s90, %s91
      %p105 = scmp.eq.s32.totalorder %s15, 1
      %p106 = por %p104, %p105
      %p108 = scmp.ne.s32.totalorder %s91, %s107
      %p109 = scmp.eq.s32.totalorder %s15, 0
      %p110 = por %p108, %p109
      %p111 = scmp.le.s32.totalorder 1, %s9
      %p112 = scmp.lt.s32.totalorder %s9, 3
      %p113 = pnand %p111, %p112
      %p114 = pneg %p113
      // Predicated region
      $region9: #{tpu_custom_call.1} parent=5 // pred_check
        _
      $region10: #{tpu_custom_call.1} parent=5 // pred_check_branch
        %116 = sbr.rel (%p113) target = $region12
      $region11: #{tpu_custom_call.1} parent=5 // pred_region
        %s117 = ssub.s32 %s9, 1
        // Predicated region
        $region13: #{tpu_custom_call.1} parent=11 // pred_check
          %p118 = pneg %p56
        $region14: #{tpu_custom_call.1} parent=11 // pred_check_branch
          %120 = sbr.rel (%p118) target = $region16
        $region15: #{tpu_custom_call.1} parent=11 // pred_region
          _
        $region16: #{tpu_custom_call.1} parent=11 // pred_fallthru
          _
        // Predicated region
        $region17: #{tpu_custom_call.1} parent=11 // pred_check
          %p121 = pneg %p77
        $region18: #{tpu_custom_call.1} parent=11 // pred_check_branch
          %123 = sbr.rel (%p121) target = $region20
        $region19: #{tpu_custom_call.1} parent=11 // pred_region
          _
        $region20: #{tpu_custom_call.1} parent=11 // pred_fallthru
          _
      $region12: #{tpu_custom_call.1} parent=5 // pred_fallthru
        _
      %p124 = scmp.lt.s32.totalorder %s9, 2
      // Predicated region
      $region21: #{tpu_custom_call.1} parent=5 // pred_check
        %p125 = pneg %p124
      $region22: #{tpu_custom_call.1} parent=5 // pred_check_branch
        %127 = sbr.rel (%p125) target = $region24
      $region23: #{tpu_custom_call.1} parent=5 // pred_region
        // Predicated region
        $region25: #{tpu_custom_call.1} parent=23 // pred_check
          %p128 = pneg %p29
        $region26: #{tpu_custom_call.1} parent=23 // pred_check_branch
          %130 = sbr.rel (%p128) target = $region28
        $region27: #{tpu_custom_call.1} parent=23 // pred_region
          %s131 = smul.u32 13, %s9
          %s132 = ssub.s32 25, %s131
          %p133 = scmp.lt.s32.totalorder %s132, 13
          %s134 = scalar_select %p133, %s132, 13
          %s135 = smul.u32 8, %s134
          %p136 = scmp.lt.s32.totalorder %s131, 24
          %s137 = scalar_select %p136, %s131, 24
          %s138 = smul.addr %s137, 8
          %s139 = scalar_lea.vmem %s0, %s138
          %s140 = smul.u32 13, %s9
          %s141 = ssub.s32 25, %s140
          %p142 = scmp.lt.s32.totalorder %s141, 13
          %s143 = scalar_select %p142, %s141, 13
          %s144 = smul.u32 8, %s143
        $region28: #{tpu_custom_call.1} parent=23 // pred_fallthru
          _
      $region24: #{tpu_custom_call.1} parent=5 // pred_fallthru
        _
      %p145 = scmp.le.s32.totalorder 1, %s9
      %p146 = scmp.lt.s32.totalorder %s9, 3
      %p147 = pnand %p145, %p146
      %p148 = pneg %p147
      // Predicated region
      $region29: #{tpu_custom_call.1} parent=5 // pred_check
        _
      $region30: #{tpu_custom_call.1} parent=5 // pred_check_branch
        %150 = sbr.rel (%p147) target = $region32
      $region31: #{tpu_custom_call.1} parent=5 // pred_region
        %s151 = ssub.s32 %s9, 1
        %s152 = smul.u32 13, %s14
        %s153 = ssub.s32 25, %s152
        %p154 = scmp.lt.s32.totalorder %s153, 13
        %s155 = scalar_select %p154, %s153, 13
        %s156 = smul.u32 8, %s155
        %p157 = scmp.lt.s32.totalorder %s152, 24
        %s158 = scalar_select %p157, %s152, 24
        %s159 = smul.addr %s158, 8
        %s160 = scalar_lea.vmem %s0, %s159
        %p161 = pneg %p35
        %p162 = pneg %p32
        %p163 = pneg %p56
        %p164 = pneg %p53
        %p165 = pneg %p77
        %p166 = pneg %p74
        %p167 = pneg %p103
        %p168 = pneg %p100
        %s169 = sand.u32 %s90, 1
        %s170 = sand.u32 %s90, 1
        %s171 = smul.addr %s170, 104
        %s172 = scalar_lea.vmem [#allocation2], %s171
        %s173 = smul.u32 13, %s14
        %s174 = ssub.s32 25, %s173
        %p175 = scmp.lt.s32.totalorder %s174, 13
        %s176 = scalar_select %p175, %s174, 13
        %s177 = smul.u32 8, %s176
        %p178 = scmp.lt.s32.totalorder %s173, 24
        %s179 = scalar_select %p178, %s173, 24
        %s180 = smul.addr %s179, 8
        %s181 = scalar_lea.vmem %s0, %s180
        %s182 = smul.u32 13, %s14
        %s183 = ssub.s32 25, %s182
        %p184 = scmp.lt.s32.totalorder %s183, 13
        %s185 = scalar_select %p184, %s183, 13
        %s186 = smul.u32 8, %s185
        %s187 = smul.u32 13, %s14
        %s188 = ssub.s32 25, %s187
        %p189 = scmp.lt.s32.totalorder %s188, 13
        %s190 = scalar_select %p189, %s188, 13
        %s191 = smul.u32 8, %s190
        %v192 = vld [vmem:[%s181] sm:$0xff]
        %v193 = vld [vmem:[%s181 + $0x8] sm:$0xff]
        %v194 = vld [vmem:[%s181 + $0x10] sm:$0xff]
        %v195 = vld [vmem:[%s181 + $0x18] sm:$0xff]
        %v196 = vld [vmem:[%s181 + $0x20] sm:$0xff]
        %v197 = vld [vmem:[%s181 + $0x28] sm:$0xff]
        %v198 = vld [vmem:[%s181 + $0x30] sm:$0xff]
        %v199 = vld [vmem:[%s181 + $0x38] sm:$0xff]
        %v200 = vld [vmem:[%s181 + $0x40] sm:$0xff]
        %v201 = vld [vmem:[%s181 + $0x48] sm:$0xff]
        %v202 = vld [vmem:[%s181 + $0x50] sm:$0xff]
        %v203 = vld [vmem:[%s181 + $0x58] sm:$0xff]
        %v204 = vld [vmem:[%s181 + $0x60] sm:$0xff]
        %v205 = vld [vmem:[%s1] sm:$0xff]
        %v206 = vld [vmem:[%s1 + $0x8] sm:$0xff]
        %v207 = vld [vmem:[%s1 + $0x10] sm:$0xff]
        %v208 = vld [vmem:[%s1 + $0x18] sm:$0xff]
        %v209 = vld [vmem:[%s2] sm:$0x1]
        %v211 = vperm.slane %v209, 0
        %vm213 = vcmask 261120
        %v215 = vsel %vm213, %v192, 0
        %v218 = vsel %vm213, %v193, 0
        %v221 = vsel %vm213, %v194, 0
        %v224 = vsel %vm213, %v195, 0
        %v227 = vsel %vm213, %v196, 0
        %v230 = vsel %vm213, %v197, 0
        %v233 = vsel %vm213, %v198, 0
        %v236 = vsel %vm213, %v199, 0
        %v239 = vsel %vm213, %v200, 0
        %v242 = vsel %vm213, %v201, 0
        %v245 = vsel %vm213, %v202, 0
        %v248 = vsel %vm213, %v203, 0
        %v251 = vsel %vm213, %v204, 0
        %253 = vmatpush.msra.mxu0 0.0
        %254 = vmatpush.msra.mxu0 0.0
        %255 = vmatpush.msra.mxu0 0.0
        %256 = vmatpush.msra.mxu0 0.0
        %257 = vmatpush.msra.mxu0 0.0
        %258 = vmatpush.msra.mxu0 0.0
        %259 = vmatpush.msra.mxu0 0.0
        %260 = vmatpush.msra.mxu0 0.0
        %261 = vmatpush.msra.mxu0 0.0
        %262 = vmatpush.msra.mxu0 0.0
        %263 = vmatpush.msra.mxu0 0.0
        %264 = vmatpush.msra.mxu0 0.0
        %265 = vmatpush.msra.mxu0 %v208
        %266 = vmatpush.msra.mxu0 %v207
        %267 = vmatpush.msra.mxu0 %v206
        %268 = vmatpush.msra.mxu0 %v205
        %269 = vmatmul.f32.gmra.mxu0 %v215
        %v270 = vpop.f32.mrf.mxu0
        %v271 = vadd.f32 %v211, %v270
        %272 = vmatmul.f32.gmra.mxu0 %v218
        %v273 = vpop.f32.mrf.mxu0
        %v274 = vadd.f32 %v211, %v273
        %275 = vmatmul.f32.gmra.mxu0 %v221
        %v276 = vpop.f32.mrf.mxu0
        %v277 = vadd.f32 %v211, %v276
        %278 = vmatmul.f32.gmra.mxu0 %v224
        %v279 = vpop.f32.mrf.mxu0
        %v280 = vadd.f32 %v211, %v279
        %281 = vmatmul.f32.gmra.mxu0 %v227
        %v282 = vpop.f32.mrf.mxu0
        %v283 = vadd.f32 %v211, %v282
        %284 = vmatmul.f32.gmra.mxu0 %v230
        %v285 = vpop.f32.mrf.mxu0
        %v286 = vadd.f32 %v211, %v285
        %287 = vmatmul.f32.gmra.mxu0 %v233
        %v288 = vpop.f32.mrf.mxu0
        %v289 = vadd.f32 %v211, %v288
        %290 = vmatmul.f32.gmra.mxu0 %v236
        %v291 = vpop.f32.mrf.mxu0
        %v292 = vadd.f32 %v211, %v291
        %293 = vmatmul.f32.gmra.mxu0 %v239
        %v294 = vpop.f32.mrf.mxu0
        %v295 = vadd.f32 %v211, %v294
        %296 = vmatmul.f32.gmra.mxu0 %v242
        %v297 = vpop.f32.mrf.mxu0
        %v298 = vadd.f32 %v211, %v297
        %299 = vmatmul.f32.gmra.mxu0 %v245
        %v300 = vpop.f32.mrf.mxu0
        %v301 = vadd.f32 %v211, %v300
        %302 = vmatmul.f32.gmra.mxu0 %v248
        %v303 = vpop.f32.mrf.mxu0
        %v304 = vadd.f32 %v211, %v303
        %305 = vmatmul.f32.gmra.mxu0 %v251
        %v306 = vpop.f32.mrf.mxu0
        %v307 = vadd.f32 %v211, %v306
        %308 = vdwg.mxu0
        %vm309 = vcmask 130048
        %310 = vst.msk [vmem:[%s172] sm:$0xff] %vm309, %v271
        %311 = vst.msk [vmem:[%s172 + $0x8] sm:$0xff] %vm309, %v274
        %312 = vst.msk [vmem:[%s172 + $0x10] sm:$0xff] %vm309, %v277
        %313 = vst.msk [vmem:[%s172 + $0x18] sm:$0xff] %vm309, %v280
        %314 = vst.msk [vmem:[%s172 + $0x20] sm:$0xff] %vm309, %v283
        %315 = vst.msk [vmem:[%s172 + $0x28] sm:$0xff] %vm309, %v286
        %316 = vst.msk [vmem:[%s172 + $0x30] sm:$0xff] %vm309, %v289
        %317 = vst.msk [vmem:[%s172 + $0x38] sm:$0xff] %vm309, %v292
        %318 = vst.msk [vmem:[%s172 + $0x40] sm:$0xff] %vm309, %v295
        %319 = vst.msk [vmem:[%s172 + $0x48] sm:$0xff] %vm309, %v298
        %320 = vst.msk [vmem:[%s172 + $0x50] sm:$0xff] %vm309, %v301
        %321 = vst.msk [vmem:[%s172 + $0x58] sm:$0xff] %vm309, %v304
        %322 = vst.msk [vmem:[%s172 + $0x60] sm:$0xff] %vm309, %v307
        %s323 = sand.u32 %s90, 1
        %s324 = sand.u32 %s90, 1
        %s325 = smul.addr %s324, 104
        %s326 = scalar_lea.vmem [#allocation2], %s325
        // Predicated region
        $region33: #{tpu_custom_call.1} parent=31 // pred_check
          %p327 = pneg %p100
        $region34: #{tpu_custom_call.1} parent=31 // pred_check_branch
          %329 = sbr.rel (%p327) target = $region36
        $region35: #{tpu_custom_call.1} parent=31 // pred_region
          %s330 = smul.u32 13, %s14
          %s331 = ssub.s32 25, %s330
          %p332 = scmp.lt.s32.totalorder %s331, 13
          %s333 = scalar_select %p332, %s331, 13
          %s334 = smul.u32 8, %s333
          %p335 = scmp.ne.s32.totalorder 0, %s334
          %s336 = smul.addr %s330, 8
          %s337 = scalar_lea.vmem %s3, %s336
          // Predicated region
          $region37: #{tpu_custom_call.1} parent=35 // pred_check
            %p338 = pneg %p335
          $region38: #{tpu_custom_call.1} parent=35 // pred_check_branch
            %340 = sbr.rel (%p338) target = $region40
          $region39: #{tpu_custom_call.1} parent=35 // pred_region
            // Predicated region
            $region41: #{tpu_custom_call.1} parent=39 // pred_check
              _
            $region42: #{tpu_custom_call.1} parent=39 // pred_check_branch
              %342 = sbr.rel (0) target = $region44
            $region43: #{tpu_custom_call.1} parent=39 // pred_region
              // Predicated region
              $region63: #{tpu_custom_call.1} parent=43 // pred_check
                _
              $region64: #{tpu_custom_call.1} parent=43 // pred_check_branch
                %417 = sbr.rel (0) target = $region66
              $region65: #{tpu_custom_call.1} parent=43 // pred_region
                %s418 = sdiv.u32.pop %s333, 13
                %s419 = srem.u32.pop %s333, 13
                // While loop
                $region67: #{tpu_custom_call.1} parent=65 // loop_pre_header
                  _
                $region68: #{tpu_custom_call.1} parent=65 // loop_header
                  %s421 = sphi 0, %s423
                  %p422 = scmp.ge.s32.totalorder %s421, %s418
                  %s426 = sphi 0, %s457
                  %s427 = sphi %s326, %s460
                  %s428 = sphi %s337, %s461
                $region69: #{tpu_custom_call.1} parent=65 // loop_header_branch
                  %425 = sbr.rel (%p422) target = $region73
                $region70: #{tpu_custom_call.1} parent=65 // loop_body
                  %v429 = vld [vmem:[%s427] sm:$0xff]
                  %430 = vst [vmem:[%s428] sm:$0xff] %v429
                  %v431 = vld [vmem:[%s427 + $0x8] sm:$0xff]
                  %432 = vst [vmem:[%s428 + $0x8] sm:$0xff] %v431
                  %v433 = vld [vmem:[%s427 + $0x10] sm:$0xff]
                  %434 = vst [vmem:[%s428 + $0x10] sm:$0xff] %v433
                  %v435 = vld [vmem:[%s427 + $0x18] sm:$0xff]
                  %436 = vst [vmem:[%s428 + $0x18] sm:$0xff] %v435
                  %v437 = vld [vmem:[%s427 + $0x20] sm:$0xff]
                  %438 = vst [vmem:[%s428 + $0x20] sm:$0xff] %v437
                  %v439 = vld [vmem:[%s427 + $0x28] sm:$0xff]
                  %440 = vst [vmem:[%s428 + $0x28] sm:$0xff] %v439
                  %v441 = vld [vmem:[%s427 + $0x30] sm:$0xff]
                  %442 = vst [vmem:[%s428 + $0x30] sm:$0xff] %v441
                  %v443 = vld [vmem:[%s427 + $0x38] sm:$0xff]
                  %444 = vst [vmem:[%s428 + $0x38] sm:$0xff] %v443
                  %v445 = vld [vmem:[%s427 + $0x40] sm:$0xff]
                  %446 = vst [vmem:[%s428 + $0x40] sm:$0xff] %v445
                  %v447 = vld [vmem:[%s427 + $0x48] sm:$0xff]
                  %448 = vst [vmem:[%s428 + $0x48] sm:$0xff] %v447
                  %v449 = vld [vmem:[%s427 + $0x50] sm:$0xff]
                  %450 = vst [vmem:[%s428 + $0x50] sm:$0xff] %v449
                  %v451 = vld [vmem:[%s427 + $0x58] sm:$0xff]
                  %452 = vst [vmem:[%s428 + $0x58] sm:$0xff] %v451
                  %v453 = vld [vmem:[%s427 + $0x60] sm:$0xff]
                  %454 = vst [vmem:[%s428 + $0x60] sm:$0xff] %v453
                  %s455 = sadd.s32 1, %s426
                  %p456 = scmp.ge.s32.totalorder %s455, %s418
                  %s457 = scalar_select %p456, 0, %s455
                  %s458 = smul.u32 %s457, 104
                  %s459 = smul.u32 %s457, 104
                  %s460 = scalar_lea.vmem %s326, %s458 [#allocation2]
                  %s461 = scalar_lea.vmem %s337, %s459
                $region71: #{tpu_custom_call.1} parent=65 // loop_footer
                  %s423 = sadd.s32 %s421, 1
                $region72: #{tpu_custom_call.1} parent=65 // loop_footer_branch
                  %420 = sbr.rel target = $region68
                $region73: #{tpu_custom_call.1} parent=65 // loop_exit
                  _
                %s462 = sdiv.u32.pop %s333, 13
                %s463 = srem.u32.pop %s333, 13
                %s464 = smul.u32 %s462, 13
                %s465 = smul.u32 8, %s464
                %s466 = scalar_lea.vmem %s326, %s465 [#allocation2]
                %s467 = smul.u32 8, %s464
                %s468 = scalar_lea.vmem %s337, %s467
                // While loop
                $region74: #{tpu_custom_call.1} parent=65 // loop_pre_header
                  _
                $region75: #{tpu_custom_call.1} parent=65 // loop_header
                  %s470 = sphi 0, %s472
                  %p471 = scmp.ge.s32.totalorder %s470, %s463
                  %s475 = sphi 0, %s482
                  %s476 = sphi %s466, %s485
                  %s477 = sphi %s468, %s486
                $region76: #{tpu_custom_call.1} parent=65 // loop_header_branch
                  %474 = sbr.rel (%p471) target = $region80
                $region77: #{tpu_custom_call.1} parent=65 // loop_body
                  %v478 = vld [vmem:[%s476] sm:$0xff]
                  %479 = vst [vmem:[%s477] sm:$0xff] %v478
                  %s480 = sadd.s32 1, %s475
                  %p481 = scmp.ge.s32.totalorder %s480, %s463
                  %s482 = scalar_select %p481, 0, %s480
                  %s483 = smul.u32 %s482, 8
                  %s484 = smul.u32 %s482, 8
                  %s485 = scalar_lea.vmem %s466, %s483 [#allocation2]
                  %s486 = scalar_lea.vmem %s468, %s484
                $region78: #{tpu_custom_call.1} parent=65 // loop_footer
                  %s472 = sadd.s32 %s470, 1
                $region79: #{tpu_custom_call.1} parent=65 // loop_footer_branch
                  %469 = sbr.rel target = $region75
                $region80: #{tpu_custom_call.1} parent=65 // loop_exit
                  _
              $region66: #{tpu_custom_call.1} parent=43 // pred_fallthru
                _
              // Predicated region
              $region81: #{tpu_custom_call.1} parent=43 // pred_check
                _
              $region82: #{tpu_custom_call.1} parent=43 // pred_check_branch
                %488 = sbr.rel target = $region84
              $region83: #{tpu_custom_call.1} parent=43 // pred_region
                _
              $region84: #{tpu_custom_call.1} parent=43 // pred_fallthru
                _
            $region44: #{tpu_custom_call.1} parent=39 // pred_fallthru
              _
            // Predicated region
            $region45: #{tpu_custom_call.1} parent=39 // pred_check
              _
            $region46: #{tpu_custom_call.1} parent=39 // pred_check_branch
              %344 = sbr.rel target = $region48
            $region47: #{tpu_custom_call.1} parent=39 // pred_region
              %s346 = ssub.s32 256, 1
              %s347 = sdiv.u32.pop %s333, 13
              %s348 = srem.u32.pop %s333, 13
              // While loop
              $region49: #{tpu_custom_call.1} parent=47 // loop_pre_header
                _
              $region50: #{tpu_custom_call.1} parent=47 // loop_header
                %s350 = sphi 0, %s352
                %p351 = scmp.ge.s32.totalorder %s350, %s347
                %s355 = sphi 0, %s386
                %s356 = sphi %s326, %s389
                %s357 = sphi %s337, %s390
              $region51: #{tpu_custom_call.1} parent=47 // loop_header_branch
                %354 = sbr.rel (%p351) target = $region55
              $region52: #{tpu_custom_call.1} parent=47 // loop_body
                %v358 = vld [vmem:[%s356] sm:%s346]
                %359 = vst [vmem:[%s357] sm:%s346] %v358
                %v360 = vld [vmem:[%s356 + $0x8] sm:%s346]
                %361 = vst [vmem:[%s357 + $0x8] sm:%s346] %v360
                %v362 = vld [vmem:[%s356 + $0x10] sm:%s346]
                %363 = vst [vmem:[%s357 + $0x10] sm:%s346] %v362
                %v364 = vld [vmem:[%s356 + $0x18] sm:%s346]
                %365 = vst [vmem:[%s357 + $0x18] sm:%s346] %v364
                %v366 = vld [vmem:[%s356 + $0x20] sm:%s346]
                %367 = vst [vmem:[%s357 + $0x20] sm:%s346] %v366
                %v368 = vld [vmem:[%s356 + $0x28] sm:%s346]
                %369 = vst [vmem:[%s357 + $0x28] sm:%s346] %v368
                %v370 = vld [vmem:[%s356 + $0x30] sm:%s346]
                %371 = vst [vmem:[%s357 + $0x30] sm:%s346] %v370
                %v372 = vld [vmem:[%s356 + $0x38] sm:%s346]
                %373 = vst [vmem:[%s357 + $0x38] sm:%s346] %v372
                %v374 = vld [vmem:[%s356 + $0x40] sm:%s346]
                %375 = vst [vmem:[%s357 + $0x40] sm:%s346] %v374
                %v376 = vld [vmem:[%s356 + $0x48] sm:%s346]
                %377 = vst [vmem:[%s357 + $0x48] sm:%s346] %v376
                %v378 = vld [vmem:[%s356 + $0x50] sm:%s346]
                %379 = vst [vmem:[%s357 + $0x50] sm:%s346] %v378
                %v380 = vld [vmem:[%s356 + $0x58] sm:%s346]
                %381 = vst [vmem:[%s357 + $0x58] sm:%s346] %v380
                %v382 = vld [vmem:[%s356 + $0x60] sm:%s346]
                %383 = vst [vmem:[%s357 + $0x60] sm:%s346] %v382
                %s384 = sadd.s32 1, %s355
                %p385 = scmp.ge.s32.totalorder %s384, %s347
                %s386 = scalar_select %p385, 0, %s384
                %s387 = smul.u32 %s386, 104
                %s388 = smul.u32 %s386, 104
                %s389 = scalar_lea.vmem %s326, %s387 [#allocation2]
                %s390 = scalar_lea.vmem %s337, %s388
              $region53: #{tpu_custom_call.1} parent=47 // loop_footer
                %s352 = sadd.s32 %s350, 1
              $region54: #{tpu_custom_call.1} parent=47 // loop_footer_branch
                %349 = sbr.rel target = $region50
              $region55: #{tpu_custom_call.1} parent=47 // loop_exit
                _
              %s391 = sdiv.u32.pop %s333, 13
              %s392 = srem.u32.pop %s333, 13
              %s393 = smul.u32 %s391, 13
              %s394 = smul.u32 8, %s393
              %s395 = scalar_lea.vmem %s326, %s394 [#allocation2]
              %s396 = smul.u32 8, %s393
              %s397 = scalar_lea.vmem %s337, %s396
              // While loop
              $region56: #{tpu_custom_call.1} parent=47 // loop_pre_header
                _
              $region57: #{tpu_custom_call.1} parent=47 // loop_header
                %s399 = sphi 0, %s401
                %p400 = scmp.ge.s32.totalorder %s399, %s392
                %s404 = sphi 0, %s411
                %s405 = sphi %s395, %s414
                %s406 = sphi %s397, %s415
              $region58: #{tpu_custom_call.1} parent=47 // loop_header_branch
                %403 = sbr.rel (%p400) target = $region62
              $region59: #{tpu_custom_call.1} parent=47 // loop_body
                %v407 = vld [vmem:[%s405] sm:%s346]
                %408 = vst [vmem:[%s406] sm:%s346] %v407
                %s409 = sadd.s32 1, %s404
                %p410 = scmp.ge.s32.totalorder %s409, %s392
                %s411 = scalar_select %p410, 0, %s409
                %s412 = smul.u32 %s411, 8
                %s413 = smul.u32 %s411, 8
                %s414 = scalar_lea.vmem %s395, %s412 [#allocation2]
                %s415 = scalar_lea.vmem %s397, %s413
              $region60: #{tpu_custom_call.1} parent=47 // loop_footer
                %s401 = sadd.s32 %s399, 1
              $region61: #{tpu_custom_call.1} parent=47 // loop_footer_branch
                %398 = sbr.rel target = $region57
              $region62: #{tpu_custom_call.1} parent=47 // loop_exit
                _
            $region48: #{tpu_custom_call.1} parent=39 // pred_fallthru
              _
          $region40: #{tpu_custom_call.1} parent=35 // pred_fallthru
            _
          %489 = vnop
        $region36: #{tpu_custom_call.1} parent=31 // pred_fallthru
          _
      $region32: #{tpu_custom_call.1} parent=5 // pred_fallthru
        _
      %p490 = scmp.le.s32.totalorder 2, %s9
      // Predicated region
      $region85: #{tpu_custom_call.1} parent=5 // pred_check
        %p491 = pneg %p490
      $region86: #{tpu_custom_call.1} parent=5 // pred_check_branch
        %493 = sbr.rel (%p491) target = $region88
      $region87: #{tpu_custom_call.1} parent=5 // pred_region
        %s494 = ssub.s32 %s9, 2
        // Predicated region
        $region89: #{tpu_custom_call.1} parent=87 // pred_check
          %p495 = pneg %p106
        $region90: #{tpu_custom_call.1} parent=87 // pred_check_branch
          %497 = sbr.rel (%p495) target = $region92
        $region91: #{tpu_custom_call.1} parent=87 // pred_region
          %s498 = sand.u32 %s91, 1
          %s499 = sand.u32 %s91, 1
          %s500 = smul.addr %s499, 104
          %s501 = scalar_lea.vmem [#allocation2], %s500
        $region92: #{tpu_custom_call.1} parent=87 // pred_fallthru
          _
      $region88: #{tpu_custom_call.1} parent=5 // pred_fallthru
        _
    $region6: #{tpu_custom_call.1} parent=1 // loop_footer
      %s13 = sadd.s32 1, %s9
    $region7: #{tpu_custom_call.1} parent=1 // loop_footer_branch
      %8 = sbr.rel target = $region3
    $region8: #{tpu_custom_call.1} parent=1 // loop_exit
      _

// kernel: tpu_custom_call.1
$region0: #{tpu_custom_call.1}
  #allocation0 [shape = 'u32[]', space=smem, size = 0x4, offset = 0x4, fixed_abs, tag = 'smem constant byte address 0x4 - core index']
  #allocation1 [shape = 'u32[72,128]{1,0:T(1,128)}', space=vmem, size = 0x9000, scoped, tag = 'internal scratch']
  %s0 = inlined_call_operand.vmem [shape: f32[200,32], index: 0, kind: input, shape index: {}]
  %s1 = inlined_call_operand.vmem [shape: f32[32,16], index: 1, kind: input, shape index: {}]
  %s2 = inlined_call_operand.vmem [shape: f32[1,16], index: 2, kind: input, shape index: {}]
  %s3 = inlined_call_operand.vmem [shape: f32[200,16], index: 3, kind: output, shape index: {}]
  %s4 = sld [smem:[#allocation0]]
  $region93: #{tpu_custom_call.1} parent=0
    _
  %s6 = ssub.s32 1, %s4
  %s7 = scalar_select 0, %s6, %s4
  $region1: #{tpu_custom_call.1} parent=0
    #allocation2 [shape = 'u8[106496]{0}', space=vmem, size = 0x1a000, scoped, tag = 'output window, operand 0']
    loop: start=0, step=1, limit=4
    $region2: #{tpu_custom_call.1} parent=1 // loop_pre_header
      _
    $region3: #{tpu_custom_call.1} parent=1 // loop_header
      %s9 = sphi 0, %s13
      %p10 = scmp.ge.s32.totalorder %s9, 4
      %s19 = sphi 0, %s21
      %s22 = sphi 0, %s19
      %s23 = sphi 0, %s22
      %s39 = sphi 0, %s23
      %s43 = sphi 0, %s43
      %s45 = sphi 0, %s43
      %s46 = sphi 0, %s45
      %s60 = sphi 0, %s46
      %s64 = sphi 0, %s64
      %s66 = sphi 0, %s64
      %s67 = sphi 0, %s66
      %s81 = sphi 0, %s67
      %s87 = sphi 0, %s89
      %s90 = sphi 0, %s87
      %s91 = sphi 0, %s90
      %s107 = sphi 0, %s91
    $region4: #{tpu_custom_call.1} parent=1 // loop_header_branch
      %12 = sbr.rel (%p10) target = $region8
    $region5: #{tpu_custom_call.1} parent=1 // loop_body
      %s14 = ssub.s32 %s9, 1
      %s15 = ssub.s32 %s9, 2
      %s16 = sadd.s32 %s9, 1
      %s17 = ssub.s32 %s9, %s16
      %p18 = scmp.eq.s32.totalorder %s17, 0
      %s20 = sadd.s32 %s19, 1
      %s21 = scalar_select %p18, %s19, %s20
      %p24 = pneg %p18
      %p25 = scmp.eq.s32.totalorder %s9, 1
      %p26 = por %p24, %p25
      %p27 = scmp.ne.s32.totalorder %s19, %s22
      %p28 = scmp.eq.s32.totalorder %s9, 0
      %p29 = por %p27, %p28
      %p30 = scmp.ne.s32.totalorder %s19, %s22
      %p31 = scmp.eq.s32.totalorder %s14, 1
      %p32 = por %p30, %p31
      %p33 = scmp.ne.s32.totalorder %s22, %s23
      %p34 = scmp.eq.s32.totalorder %s14, 0
      %p35 = por %p33, %p34
      %p36 = scmp.ne.s32.totalorder %s22, %s23
      %p37 = scmp.eq.s32.totalorder %s15, 1
      %p38 = por %p36, %p37
      %p40 = scmp.ne.s32.totalorder %s23, %s39
      %p41 = scmp.eq.s32.totalorder %s15, 0
      %p42 = por %p40, %p41
      %s44 = sadd.s32 %s43, 1
      %p47 = scmp.eq.s32.totalorder %s9, 1
      %p48 = scmp.ne.s32.totalorder %s43, %s45
      %p49 = scmp.eq.s32.totalorder %s9, 0
      %p50 = por %p48, %p49
      %p51 = scmp.ne.s32.totalorder %s43, %s45
      %p52 = scmp.eq.s32.totalorder %s14, 1
      %p53 = por %p51, %p52
      %p54 = scmp.ne.s32.totalorder %s45, %s46
      %p55 = scmp.eq.s32.totalorder %s14, 0
      %p56 = por %p54, %p55
      %p57 = scmp.ne.s32.totalorder %s45, %s46
      %p58 = scmp.eq.s32.totalorder %s15, 1
      %p59 = por %p57, %p58
      %p61 = scmp.ne.s32.totalorder %s46, %s60
      %p62 = scmp.eq.s32.totalorder %s15, 0
      %p63 = por %p61, %p62
      %s65 = sadd.s32 %s64, 1
      %p68 = scmp.eq.s32.totalorder %s9, 1
      %p69 = scmp.ne.s32.totalorder %s64, %s66
      %p70 = scmp.eq.s32.totalorder %s9, 0
      %p71 = por %p69, %p70
      %p72 = scmp.ne.s32.totalorder %s64, %s66
      %p73 = scmp.eq.s32.totalorder %s14, 1
      %p74 = por %p72, %p73
      %p75 = scmp.ne.s32.totalorder %s66, %s67
      %p76 = scmp.eq.s32.totalorder %s14, 0
      %p77 = por %p75, %p76
      %p78 = scmp.ne.s32.totalorder %s66, %s67
      %p79 = scmp.eq.s32.totalorder %s15, 1
      %p80 = por %p78, %p79
      %p82 = scmp.ne.s32.totalorder %s67, %s81
      %p83 = scmp.eq.s32.totalorder %s15, 0
      %p84 = por %p82, %p83
      %s85 = ssub.s32 %s9, %s16
      %p86 = scmp.eq.s32.totalorder %s85, 0
      %s88 = sadd.s32 %s87, 1
      %s89 = scalar_select %p86, %s87, %s88
      %p92 = pneg %p86
      %p93 = scmp.eq.s32.totalorder %s9, 1
      %p94 = por %p92, %p93
      %p95 = scmp.ne.s32.totalorder %s87, %s90
      %p96 = scmp.eq.s32.totalorder %s9, 0
      %p97 = por %p95, %p96
      %p98 = scmp.ne.s32.totalorder %s87, %s90
      %p99 = scmp.eq.s32.totalorder %s14, 1
      %p100 = por %p98, %p99
      %p101 = scmp.ne.s32.totalorder %s90, %s91
      %p102 = scmp.eq.s32.totalorder %s14, 0
      %p103 = por %p101, %p102
      %p104 = scmp.ne.s32.totalorder %s90, %s91
      %p105 = scmp.eq.s32.totalorder %s15, 1
      %p106 = por %p104, %p105
      %p108 = scmp.ne.s32.totalorder %s91, %s107
      %p109 = scmp.eq.s32.totalorder %s15, 0
      %p110 = por %p108, %p109
      %p111 = scmp.le.s32.totalorder 1, %s9
      %p112 = scmp.lt.s32.totalorder %s9, 3
      %p113 = pnand %p111, %p112
      %p114 = pneg %p113
      // Predicated region
      $region9: #{tpu_custom_call.1} parent=5 // pred_check
        _
      $region10: #{tpu_custom_call.1} parent=5 // pred_check_branch
        %116 = sbr.rel (%p113) target = $region12
      $region11: #{tpu_custom_call.1} parent=5 // pred_region
        %s117 = ssub.s32 %s9, 1
        // Predicated region
        $region13: #{tpu_custom_call.1} parent=11 // pred_check
          %p118 = pneg %p56
        $region14: #{tpu_custom_call.1} parent=11 // pred_check_branch
          %120 = sbr.rel (%p118) target = $region16
        $region15: #{tpu_custom_call.1} parent=11 // pred_region
          _
        $region16: #{tpu_custom_call.1} parent=11 // pred_fallthru
          _
        // Predicated region
        $region17: #{tpu_custom_call.1} parent=11 // pred_check
          %p121 = pneg %p77
        $region18: #{tpu_custom_call.1} parent=11 // pred_check_branch
          %123 = sbr.rel (%p121) target = $region20
        $region19: #{tpu_custom_call.1} parent=11 // pred_region
          _
        $region20: #{tpu_custom_call.1} parent=11 // pred_fallthru
          _
      $region12: #{tpu_custom_call.1} parent=5 // pred_fallthru
        _
      %p124 = scmp.lt.s32.totalorder %s9, 2
      // Predicated region
      $region21: #{tpu_custom_call.1} parent=5 // pred_check
        %p125 = pneg %p124
      $region22: #{tpu_custom_call.1} parent=5 // pred_check_branch
        %127 = sbr.rel (%p125) target = $region24
      $region23: #{tpu_custom_call.1} parent=5 // pred_region
        // Predicated region
        $region25: #{tpu_custom_call.1} parent=23 // pred_check
          %p128 = pneg %p29
        $region26: #{tpu_custom_call.1} parent=23 // pred_check_branch
          %130 = sbr.rel (%p128) target = $region28
        $region27: #{tpu_custom_call.1} parent=23 // pred_region
          %s131 = smul.u32 13, %s9
          %s132 = ssub.s32 25, %s131
          %p133 = scmp.lt.s32.totalorder %s132, 13
          %s134 = scalar_select %p133, %s132, 13
          %s135 = smul.u32 8, %s134
          %p136 = scmp.lt.s32.totalorder %s131, 24
          %s137 = scalar_select %p136, %s131, 24
          %s138 = smul.addr %s137, 8
          %s139 = scalar_lea.vmem %s0, %s138
          %s140 = smul.u32 13, %s9
          %s141 = ssub.s32 25, %s140
          %p142 = scmp.lt.s32.totalorder %s141, 13
          %s143 = scalar_select %p142, %s141, 13
          %s144 = smul.u32 8, %s143
        $region28: #{tpu_custom_call.1} parent=23 // pred_fallthru
          _
      $region24: #{tpu_custom_call.1} parent=5 // pred_fallthru
        _
      %p145 = scmp.le.s32.totalorder 1, %s9
      %p146 = scmp.lt.s32.totalorder %s9, 3
      %p147 = pnand %p145, %p146
      %p148 = pneg %p147
      // Predicated region
      $region29: #{tpu_custom_call.1} parent=5 // pred_check
        _
      $region30: #{tpu_custom_call.1} parent=5 // pred_check_branch
        %150 = sbr.rel (%p147) target = $region32
      $region31: #{tpu_custom_call.1} parent=5 // pred_region
        %s151 = ssub.s32 %s9, 1
        %s152 = smul.u32 13, %s14
        %s153 = ssub.s32 25, %s152
        %p154 = scmp.lt.s32.totalorder %s153, 13
        %s155 = scalar_select %p154, %s153, 13
        %s156 = smul.u32 8, %s155
        %p157 = scmp.lt.s32.totalorder %s152, 24
        %s158 = scalar_select %p157, %s152, 24
        %s159 = smul.addr %s158, 8
        %s160 = scalar_lea.vmem %s0, %s159
        %p161 = pneg %p35
        %p162 = pneg %p32
        %p163 = pneg %p56
        %p164 = pneg %p53
        %p165 = pneg %p77
        %p166 = pneg %p74
        %p167 = pneg %p103
        %p168 = pneg %p100
        %s169 = sand.u32 %s90, 1
        %s170 = sand.u32 %s90, 1
        %s171 = smul.addr %s170, 104
        %s172 = scalar_lea.vmem [#allocation2], %s171
        %s173 = smul.u32 13, %s14
        %s174 = ssub.s32 25, %s173
        %p175 = scmp.lt.s32.totalorder %s174, 13
        %s176 = scalar_select %p175, %s174, 13
        %s177 = smul.u32 8, %s176
        %p178 = scmp.lt.s32.totalorder %s173, 24
        %s179 = scalar_select %p178, %s173, 24
        %s180 = smul.addr %s179, 8
        %s181 = scalar_lea.vmem %s0, %s180
        %s182 = smul.u32 13, %s14
        %s183 = ssub.s32 25, %s182
        %p184 = scmp.lt.s32.totalorder %s183, 13
        %s185 = scalar_select %p184, %s183, 13
        %s186 = smul.u32 8, %s185
        %s187 = smul.u32 13, %s14
        %s188 = ssub.s32 25, %s187
        %p189 = scmp.lt.s32.totalorder %s188, 13
        %s190 = scalar_select %p189, %s188, 13
        %s191 = smul.u32 8, %s190
        %v192 = vld [vmem:[%s181] sm:$0xff]
        %v193 = vld [vmem:[%s181 + $0x8] sm:$0xff]
        %v194 = vld [vmem:[%s181 + $0x10] sm:$0xff]
        %v195 = vld [vmem:[%s181 + $0x18] sm:$0xff]
        %v196 = vld [vmem:[%s181 + $0x20] sm:$0xff]
        %v197 = vld [vmem:[%s181 + $0x28] sm:$0xff]
        %v198 = vld [vmem:[%s181 + $0x30] sm:$0xff]
        %v199 = vld [vmem:[%s181 + $0x38] sm:$0xff]
        %v200 = vld [vmem:[%s181 + $0x40] sm:$0xff]
        %v201 = vld [vmem:[%s181 + $0x48] sm:$0xff]
        %v202 = vld [vmem:[%s181 + $0x50] sm:$0xff]
        %v203 = vld [vmem:[%s181 + $0x58] sm:$0xff]
        %v204 = vld [vmem:[%s181 + $0x60] sm:$0xff]
        %v205 = vld [vmem:[%s1] sm:$0xff]
        %v206 = vld [vmem:[%s1 + $0x8] sm:$0xff]
        %v207 = vld [vmem:[%s1 + $0x10] sm:$0xff]
        %v208 = vld [vmem:[%s1 + $0x18] sm:$0xff]
        %v209 = vld [vmem:[%s2] sm:$0x1]
        %v211 = vperm.slane %v209, 0
        %vm213 = vcmask 261120
        %v215 = vsel %vm213, %v192, 0
        %v218 = vsel %vm213, %v193, 0
        %v221 = vsel %vm213, %v194, 0
        %v224 = vsel %vm213, %v195, 0
        %v227 = vsel %vm213, %v196, 0
        %v230 = vsel %vm213, %v197, 0
        %v233 = vsel %vm213, %v198, 0
        %v236 = vsel %vm213, %v199, 0
        %v239 = vsel %vm213, %v200, 0
        %v242 = vsel %vm213, %v201, 0
        %v245 = vsel %vm213, %v202, 0
        %v248 = vsel %vm213, %v203, 0
        %v251 = vsel %vm213, %v204, 0
        %253 = vmatpush.msra.mxu0 0.0
        %254 = vmatpush.msra.mxu0 0.0
        %255 = vmatpush.msra.mxu0 0.0
        %256 = vmatpush.msra.mxu0 0.0
        %257 = vmatpush.msra.mxu0 0.0
        %258 = vmatpush.msra.mxu0 0.0
        %259 = vmatpush.msra.mxu0 0.0
        %260 = vmatpush.msra.mxu0 0.0
        %261 = vmatpush.msra.mxu0 0.0
        %262 = vmatpush.msra.mxu0 0.0
        %263 = vmatpush.msra.mxu0 0.0
        %264 = vmatpush.msra.mxu0 0.0
        %265 = vmatpush.msra.mxu0 %v208
        %266 = vmatpush.msra.mxu0 %v207
        %267 = vmatpush.msra.mxu0 %v206
        %268 = vmatpush.msra.mxu0 %v205
        %269 = vmatmul.f32.gmra.mxu0 %v215
        %v270 = vpop.f32.mrf.mxu0
        %v271 = vadd.f32 %v211, %v270
        %272 = vmatmul.f32.gmra.mxu0 %v218
        %v273 = vpop.f32.mrf.mxu0
        %v274 = vadd.f32 %v211, %v273
        %275 = vmatmul.f32.gmra.mxu0 %v221
        %v276 = vpop.f32.mrf.mxu0
        %v277 = vadd.f32 %v211, %v276
        %278 = vmatmul.f32.gmra.mxu0 %v224
        %v279 = vpop.f32.mrf.mxu0
        %v280 = vadd.f32 %v211, %v279
        %281 = vmatmul.f32.gmra.mxu0 %v227
        %v282 = vpop.f32.mrf.mxu0
        %v283 = vadd.f32 %v211, %v282
        %284 = vmatmul.f32.gmra.mxu0 %v230
        %v285 = vpop.f32.mrf.mxu0
        %v286 = vadd.f32 %v211, %v285
        %287 = vmatmul.f32.gmra.mxu0 %v233
        %v288 = vpop.f32.mrf.mxu0
        %v289 = vadd.f32 %v211, %v288
        %290 = vmatmul.f32.gmra.mxu0 %v236
        %v291 = vpop.f32.mrf.mxu0
        %v292 = vadd.f32 %v211, %v291
        %293 = vmatmul.f32.gmra.mxu0 %v239
        %v294 = vpop.f32.mrf.mxu0
        %v295 = vadd.f32 %v211, %v294
        %296 = vmatmul.f32.gmra.mxu0 %v242
        %v297 = vpop.f32.mrf.mxu0
        %v298 = vadd.f32 %v211, %v297
        %299 = vmatmul.f32.gmra.mxu0 %v245
        %v300 = vpop.f32.mrf.mxu0
        %v301 = vadd.f32 %v211, %v300
        %302 = vmatmul.f32.gmra.mxu0 %v248
        %v303 = vpop.f32.mrf.mxu0
        %v304 = vadd.f32 %v211, %v303
        %305 = vmatmul.f32.gmra.mxu0 %v251
        %v306 = vpop.f32.mrf.mxu0
        %v307 = vadd.f32 %v211, %v306
        %308 = vdwg.mxu0
        %vm309 = vcmask 130048
        %310 = vst.msk [vmem:[%s172] sm:$0xff] %vm309, %v271
        %311 = vst.msk [vmem:[%s172 + $0x8] sm:$0xff] %vm309, %v274
        %312 = vst.msk [vmem:[%s172 + $0x10] sm:$0xff] %vm309, %v277
        %313 = vst.msk [vmem:[%s172 + $0x18] sm:$0xff] %vm309, %v280
        %314 = vst.msk [vmem:[%s172 + $0x20] sm:$0xff] %vm309, %v283
        %315 = vst.msk [vmem:[%s172 + $0x28] sm:$0xff] %vm309, %v286
        %316 = vst.msk [vmem:[%s172 + $0x30] sm:$0xff] %vm309, %v289
        %317 = vst.msk [vmem:[%s172 + $0x38] sm:$0xff] %vm309, %v292
        %318 = vst.msk [vmem:[%s172 + $0x40] sm:$0xff] %vm309, %v295
        %319 = vst.msk [vmem:[%s172 + $0x48] sm:$0xff] %vm309, %v298
        %320 = vst.msk [vmem:[%s172 + $0x50] sm:$0xff] %vm309, %v301
        %321 = vst.msk [vmem:[%s172 + $0x58] sm:$0xff] %vm309, %v304
        %322 = vst.msk [vmem:[%s172 + $0x60] sm:$0xff] %vm309, %v307
        %s323 = sand.u32 %s90, 1
        %s324 = sand.u32 %s90, 1
        %s325 = smul.addr %s324, 104
        %s326 = scalar_lea.vmem [#allocation2], %s325
        // Predicated region
        $region33: #{tpu_custom_call.1} parent=31 // pred_check
          %p327 = pneg %p100
        $region34: #{tpu_custom_call.1} parent=31 // pred_check_branch
          %329 = sbr.rel (%p327) target = $region36
        $region35: #{tpu_custom_call.1} parent=31 // pred_region
          %s330 = smul.u32 13, %s14
          %s331 = ssub.s32 25, %s330
          %p332 = scmp.lt.s32.totalorder %s331, 13
          %s333 = scalar_select %p332, %s331, 13
          %s334 = smul.u32 8, %s333
          %p335 = scmp.ne.s32.totalorder 0, %s334
          %s336 = smul.addr %s330, 8
          %s337 = scalar_lea.vmem %s3, %s336
          // Predicated region
          $region37: #{tpu_custom_call.1} parent=35 // pred_check
            %p338 = pneg %p335
          $region38: #{tpu_custom_call.1} parent=35 // pred_check_branch
            %340 = sbr.rel (%p338) target = $region40
          $region39: #{tpu_custom_call.1} parent=35 // pred_region
            // Predicated region
            $region41: #{tpu_custom_call.1} parent=39 // pred_check
              _
            $region42: #{tpu_custom_call.1} parent=39 // pred_check_branch
              %342 = sbr.rel (0) target = $region44
            $region43: #{tpu_custom_call.1} parent=39 // pred_region
              // Predicated region
              $region63: #{tpu_custom_call.1} parent=43 // pred_check
                _
              $region64: #{tpu_custom_call.1} parent=43 // pred_check_branch
                %417 = sbr.rel (0) target = $region66
              $region65: #{tpu_custom_call.1} parent=43 // pred_region
                %s418 = sdiv.u32.pop %s333, 13
                %s419 = srem.u32.pop %s333, 13
                // While loop
                $region67: #{tpu_custom_call.1} parent=65 // loop_pre_header
                  _
                $region68: #{tpu_custom_call.1} parent=65 // loop_header
                  %s421 = sphi 0, %s423
                  %p422 = scmp.ge.s32.totalorder %s421, %s418
                  %s426 = sphi 0, %s457
                  %s427 = sphi %s326, %s460
                  %s428 = sphi %s337, %s461
                $region69: #{tpu_custom_call.1} parent=65 // loop_header_branch
                  %425 = sbr.rel (%p422) target = $region73
                $region70: #{tpu_custom_call.1} parent=65 // loop_body
                  %v429 = vld [vmem:[%s427] sm:$0xff]
                  %430 = vst [vmem:[%s428] sm:$0xff] %v429
                  %v431 = vld [vmem:[%s427 + $0x8] sm:$0xff]
                  %432 = vst [vmem:[%s428 + $0x8] sm:$0xff] %v431
                  %v433 = vld [vmem:[%s427 + $0x10] sm:$0xff]
                  %434 = vst [vmem:[%s428 + $0x10] sm:$0xff] %v433
                  %v435 = vld [vmem:[%s427 + $0x18] sm:$0xff]
                  %436 = vst [vmem:[%s428 + $0x18] sm:$0xff] %v435
                  %v437 = vld [vmem:[%s427 + $0x20] sm:$0xff]
                  %438 = vst [vmem:[%s428 + $0x20] sm:$0xff] %v437
                  %v439 = vld [vmem:[%s427 + $0x28] sm:$0xff]
                  %440 = vst [vmem:[%s428 + $0x28] sm:$0xff] %v439
                  %v441 = vld [vmem:[%s427 + $0x30] sm:$0xff]
                  %442 = vst [vmem:[%s428 + $0x30] sm:$0xff] %v441
                  %v443 = vld [vmem:[%s427 + $0x38] sm:$0xff]
                  %444 = vst [vmem:[%s428 + $0x38] sm:$0xff] %v443
                  %v445 = vld [vmem:[%s427 + $0x40] sm:$0xff]
                  %446 = vst [vmem:[%s428 + $0x40] sm:$0xff] %v445
                  %v447 = vld [vmem:[%s427 + $0x48] sm:$0xff]
                  %448 = vst [vmem:[%s428 + $0x48] sm:$0xff] %v447
                  %v449 = vld [vmem:[%s427 + $0x50] sm:$0xff]
                  %450 = vst [vmem:[%s428 + $0x50] sm:$0xff] %v449
                  %v451 = vld [vmem:[%s427 + $0x58] sm:$0xff]
                  %452 = vst [vmem:[%s428 + $0x58] sm:$0xff] %v451
                  %v453 = vld [vmem:[%s427 + $0x60] sm:$0xff]
                  %454 = vst [vmem:[%s428 + $0x60] sm:$0xff] %v453
                  %s455 = sadd.s32 1, %s426
                  %p456 = scmp.ge.s32.totalorder %s455, %s418
                  %s457 = scalar_select %p456, 0, %s455
                  %s458 = smul.u32 %s457, 104
                  %s459 = smul.u32 %s457, 104
                  %s460 = scalar_lea.vmem %s326, %s458 [#allocation2]
                  %s461 = scalar_lea.vmem %s337, %s459
                $region71: #{tpu_custom_call.1} parent=65 // loop_footer
                  %s423 = sadd.s32 %s421, 1
                $region72: #{tpu_custom_call.1} parent=65 // loop_footer_branch
                  %420 = sbr.rel target = $region68
                $region73: #{tpu_custom_call.1} parent=65 // loop_exit
                  _
                %s462 = sdiv.u32.pop %s333, 13
                %s463 = srem.u32.pop %s333, 13
                %s464 = smul.u32 %s462, 13
                %s465 = smul.u32 8, %s464
                %s466 = scalar_lea.vmem %s326, %s465 [#allocation2]
                %s467 = smul.u32 8, %s464
                %s468 = scalar_lea.vmem %s337, %s467
                // While loop
                $region74: #{tpu_custom_call.1} parent=65 // loop_pre_header
                  _
                $region75: #{tpu_custom_call.1} parent=65 // loop_header
                  %s470 = sphi 0, %s472
                  %p471 = scmp.ge.s32.totalorder %s470, %s463
                  %s475 = sphi 0, %s482
                  %s476 = sphi %s466, %s485
                  %s477 = sphi %s468, %s486
                $region76: #{tpu_custom_call.1} parent=65 // loop_header_branch
                  %474 = sbr.rel (%p471) target = $region80
                $region77: #{tpu_custom_call.1} parent=65 // loop_body
                  %v478 = vld [vmem:[%s476] sm:$0xff]
                  %479 = vst [vmem:[%s477] sm:$0xff] %v478
                  %s480 = sadd.s32 1, %s475
                  %p481 = scmp.ge.s32.totalorder %s480, %s463
                  %s482 = scalar_select %p481, 0, %s480
                  %s483 = smul.u32 %s482, 8
                  %s484 = smul.u32 %s482, 8
                  %s485 = scalar_lea.vmem %s466, %s483 [#allocation2]
                  %s486 = scalar_lea.vmem %s468, %s484
                $region78: #{tpu_custom_call.1} parent=65 // loop_footer
                  %s472 = sadd.s32 %s470, 1
                $region79: #{tpu_custom_call.1} parent=65 // loop_footer_branch
                  %469 = sbr.rel target = $region75
                $region80: #{tpu_custom_call.1} parent=65 // loop_exit
                  _
              $region66: #{tpu_custom_call.1} parent=43 // pred_fallthru
                _
              // Predicated region
              $region81: #{tpu_custom_call.1} parent=43 // pred_check
                _
              $region82: #{tpu_custom_call.1} parent=43 // pred_check_branch
                %488 = sbr.rel target = $region84
              $region83: #{tpu_custom_call.1} parent=43 // pred_region
                _
              $region84: #{tpu_custom_call.1} parent=43 // pred_fallthru
                _
            $region44: #{tpu_custom_call.1} parent=39 // pred_fallthru
              _
            // Predicated region
            $region45: #{tpu_custom_call.1} parent=39 // pred_check
              _
            $region46: #{tpu_custom_call.1} parent=39 // pred_check_branch
              %344 = sbr.rel target = $region48
            $region47: #{tpu_custom_call.1} parent=39 // pred_region
              %s346 = ssub.s32 256, 1
              %s347 = sdiv.u32.pop %s333, 13
              %s348 = srem.u32.pop %s333, 13
              // While loop
              $region49: #{tpu_custom_call.1} parent=47 // loop_pre_header
                _
              $region50: #{tpu_custom_call.1} parent=47 // loop_header
                %s350 = sphi 0, %s352
                %p351 = scmp.ge.s32.totalorder %s350, %s347
                %s355 = sphi 0, %s386
                %s356 = sphi %s326, %s389
                %s357 = sphi %s337, %s390
              $region51: #{tpu_custom_call.1} parent=47 // loop_header_branch
                %354 = sbr.rel (%p351) target = $region55
              $region52: #{tpu_custom_call.1} parent=47 // loop_body
                %v358 = vld [vmem:[%s356] sm:%s346]
                %359 = vst [vmem:[%s357] sm:%s346] %v358
                %v360 = vld [vmem:[%s356 + $0x8] sm:%s346]
                %361 = vst [vmem:[%s357 + $0x8] sm:%s346] %v360
                %v362 = vld [vmem:[%s356 + $0x10] sm:%s346]
                %363 = vst [vmem:[%s357 + $0x10] sm:%s346] %v362
                %v364 = vld [vmem:[%s356 + $0x18] sm:%s346]
                %365 = vst [vmem:[%s357 + $0x18] sm:%s346] %v364
                %v366 = vld [vmem:[%s356 + $0x20] sm:%s346]
                %367 = vst [vmem:[%s357 + $0x20] sm:%s346] %v366
                %v368 = vld [vmem:[%s356 + $0x28] sm:%s346]
                %369 = vst [vmem:[%s357 + $0x28] sm:%s346] %v368
                %v370 = vld [vmem:[%s356 + $0x30] sm:%s346]
                %371 = vst [vmem:[%s357 + $0x30] sm:%s346] %v370
                %v372 = vld [vmem:[%s356 + $0x38] sm:%s346]
                %373 = vst [vmem:[%s357 + $0x38] sm:%s346] %v372
                %v374 = vld [vmem:[%s356 + $0x40] sm:%s346]
                %375 = vst [vmem:[%s357 + $0x40] sm:%s346] %v374
                %v376 = vld [vmem:[%s356 + $0x48] sm:%s346]
                %377 = vst [vmem:[%s357 + $0x48] sm:%s346] %v376
                %v378 = vld [vmem:[%s356 + $0x50] sm:%s346]
                %379 = vst [vmem:[%s357 + $0x50] sm:%s346] %v378
                %v380 = vld [vmem:[%s356 + $0x58] sm:%s346]
                %381 = vst [vmem:[%s357 + $0x58] sm:%s346] %v380
                %v382 = vld [vmem:[%s356 + $0x60] sm:%s346]
                %383 = vst [vmem:[%s357 + $0x60] sm:%s346] %v382
                %s384 = sadd.s32 1, %s355
                %p385 = scmp.ge.s32.totalorder %s384, %s347
                %s386 = scalar_select %p385, 0, %s384
                %s387 = smul.u32 %s386, 104
                %s388 = smul.u32 %s386, 104
                %s389 = scalar_lea.vmem %s326, %s387 [#allocation2]
                %s390 = scalar_lea.vmem %s337, %s388
              $region53: #{tpu_custom_call.1} parent=47 // loop_footer
                %s352 = sadd.s32 %s350, 1
              $region54: #{tpu_custom_call.1} parent=47 // loop_footer_branch
                %349 = sbr.rel target = $region50
              $region55: #{tpu_custom_call.1} parent=47 // loop_exit
                _
              %s391 = sdiv.u32.pop %s333, 13
              %s392 = srem.u32.pop %s333, 13
              %s393 = smul.u32 %s391, 13
              %s394 = smul.u32 8, %s393
              %s395 = scalar_lea.vmem %s326, %s394 [#allocation2]
              %s396 = smul.u32 8, %s393
              %s397 = scalar_lea.vmem %s337, %s396
              // While loop
              $region56: #{tpu_custom_call.1} parent=47 // loop_pre_header
                _
              $region57: #{tpu_custom_call.1} parent=47 // loop_header
                %s399 = sphi 0, %s401
                %p400 = scmp.ge.s32.totalorder %s399, %s392
                %s404 = sphi 0, %s411
                %s405 = sphi %s395, %s414
                %s406 = sphi %s397, %s415
              $region58: #{tpu_custom_call.1} parent=47 // loop_header_branch
                %403 = sbr.rel (%p400) target = $region62
              $region59: #{tpu_custom_call.1} parent=47 // loop_body
                %v407 = vld [vmem:[%s405] sm:%s346]
                %408 = vst [vmem:[%s406] sm:%s346] %v407
                %s409 = sadd.s32 1, %s404
                %p410 = scmp.ge.s32.totalorder %s409, %s392
                %s411 = scalar_select %p410, 0, %s409
                %s412 = smul.u32 %s411, 8
                %s413 = smul.u32 %s411, 8
                %s414 = scalar_lea.vmem %s395, %s412 [#allocation2]
                %s415 = scalar_lea.vmem %s397, %s413
              $region60: #{tpu_custom_call.1} parent=47 // loop_footer
                %s401 = sadd.s32 %s399, 1
              $region61: #{tpu_custom_call.1} parent=47 // loop_footer_branch
                %398 = sbr.rel target = $region57
              $region62: #{tpu_custom_call.1} parent=47 // loop_exit
                _
            $region48: #{tpu_custom_call.1} parent=39 // pred_fallthru
              _
          $region40: #{tpu_custom_call.1} parent=35 // pred_fallthru
            _
          %489 = vnop
        $region36: #{tpu_custom_call.1} parent=31 // pred_fallthru
          _
      $region32: #{tpu_custom_call.1} parent=5 // pred_fallthru
        _
      %p490 = scmp.le.s32.totalorder 2, %s9
      // Predicated region
      $region85: #{tpu_custom_call.1} parent=5 // pred_check
        %p491 = pneg %p490
      $region86: #{tpu_custom_call.1} parent=5 // pred_check_branch
        %493 = sbr.rel (%p491) target = $region88
      $region87: #{tpu_custom_call.1} parent=5 // pred_region
        %s494 = ssub.s32 %s9, 2
        // Predicated region
        $region89: #{tpu_custom_call.1} parent=87 // pred_check
          %p495 = pneg %p106
        $region90: #{tpu_custom_call.1} parent=87 // pred_check_branch
          %497 = sbr.rel (%p495) target = $region92
        $region91: #{tpu_custom_call.1} parent=87 // pred_region
          %s498 = sand.u32 %s91, 1
          %s499 = sand.u32 %s91, 1
          %s500 = smul.addr %s499, 104
          %s501 = scalar_lea.vmem [#allocation2], %s500
        $region92: #{tpu_custom_call.1} parent=87 // pred_fallthru
          _
      $region88: #{tpu_custom_call.1} parent=5 // pred_fallthru
        _
    $region6: #{tpu_custom_call.1} parent=1 // loop_footer
      %s13 = sadd.s32 1, %s9
    $region7: #{tpu_custom_call.1} parent=1 // loop_footer_branch
      %8 = sbr.rel target = $region3
    $region8: #{tpu_custom_call.1} parent=1 // loop_exit
      _

</llo_original>
